<compile_context>
chip_gen: v5e
topology: v5e:2x2
jax: 0.10.0
libtpu: 0.0.40
codegen_flags: <defaults>
</compile_context>

<pallas_src>
import jax
import jax.numpy as jnp
from jax.experimental import pallas as pl
from jax.experimental.pallas import tpu as pltpu


def _make_projected_kernel(d_in: int, use_vpu: bool):
    """Kernel body: o = tanh(p @ W' + b') with W'/b' holding the folded projection."""

    def kernel(p_ref, w_ref, b_ref, o_ref):
        if use_vpu:
            # Tiny contraction dim: a couple of broadcast-multiplies on the VPU
            # beat an MXU pass that is almost entirely padding at K = d_in.
            acc = b_ref[...]  # (1, H_pad) broadcasts over the row tile
            for k in range(d_in):  # static unroll; d_in is small
                acc = acc + p_ref[:, k : k + 1] * w_ref[k : k + 1, :]
        else:
            acc = (
                jnp.dot(p_ref[...], w_ref[...], preferred_element_type=jnp.float32)
                + b_ref[...]
            )
        o_ref[...] = jnp.tanh(acc).astype(o_ref.dtype)

    return kernel


def projected_forward(p, comps, weight, bias, *, tile_n=1024):
    """Pallas implementation of Projected(func=Linear+Tanh, comps).forward(p).

    p:      (N, d_in) float32, d_in == number of `None` entries in comps
    comps:  sequence of (None | float); None -> take next column of p
    weight: (F, H) float32 where F == len(comps)
    bias:   (H,)   float32
    returns (N, H) float32
    """
    N, d_in = p.shape
    F = len(comps)
    H = weight.shape[1]
    assert weight.shape[0] == F
    assert sum(1 for c in comps if c is None) == d_in

    p = p.astype(jnp.float32)
    weight = weight.astype(jnp.float32)
    bias = bias.astype(jnp.float32)

    # --- Fold the projection into the Linear weights on the host (exact). ---
    #   proj(p, comps) @ W + b == p @ W' + b'
    w_rows = []
    bprime = bias
    for j, comp in enumerate(comps):
        if comp is None:
            w_rows.append(weight[j])
        else:
            bprime = bprime + jnp.float32(comp) * weight[j]
    wprime = jnp.stack(w_rows, axis=0)  # (d_in, H)

    # --- Lane-dense output: pad H to a multiple of 128 with zero columns. ---
    H_pad = max(128, ((H + 127) // 128) * 128)
    if H_pad != H:
        wprime = jnp.pad(wprime, ((0, 0), (0, H_pad - H)))
        bprime = jnp.pad(bprime, (0, H_pad - H))
    bprime2d = bprime.reshape(1, H_pad)

    # --- Batch tiling: clamp tile_n, pad rows so any N works. ---
    tile_n = max(8, min(int(tile_n), 4096))
    tile_n = (tile_n // 8) * 8
    n_rounded = max(8, ((N + 7) // 8) * 8)
    tile_n = min(tile_n, n_rounded)
    n_pad = pl.cdiv(max(N, 1), tile_n) * tile_n
    if n_pad != N:
        p = jnp.pad(p, ((0, n_pad - N), (0, 0)))
    grid = (n_pad // tile_n,)

    use_vpu = d_in <= 8  # skip the MXU when the contraction dim is tiny
    kernel = _make_projected_kernel(d_in, use_vpu)

    out = pl.pallas_call(
        kernel,
        out_shape=jax.ShapeDtypeStruct((n_pad, H_pad), jnp.float32),
        grid_spec=pl.GridSpec(
            grid=grid,
            in_specs=[
                pl.BlockSpec((tile_n, d_in), lambda i: (i, 0)),   # p tile
                pl.BlockSpec((d_in, H_pad), lambda i: (0, 0)),    # folded weight
                pl.BlockSpec((1, H_pad), lambda i: (0, 0)),       # folded bias
            ],
            out_specs=pl.BlockSpec((tile_n, H_pad), lambda i: (i, 0)),
        ),
        compiler_params=pltpu.CompilerParams(
            dimension_semantics=("parallel",)
        ),
    )(p, wprime, bprime2d)

    return out[:N, :H]


def projected_reference(p, comps, weight, bias):
    """Plain-JAX reference matching fealpy's proj + Linear + Tanh."""
    cols = []
    k = 0
    for comp in comps:
        if comp is None:
            cols.append(p[..., k : k + 1])
            k += 1
        else:
            cols.append(jnp.full(p.shape[:-1] + (1,), comp, dtype=p.dtype))
    inputs = jnp.concatenate(cols, axis=-1)
    return jnp.tanh(inputs @ weight + bias[None, :])


if __name__ == "__main__":
    key = jax.random.PRNGKey(0)
    k_p, k_w, k_b = jax.random.split(key, 3)

    N, d_in = 256, 2
    comps = [None, 0.5, None]          # projected feature dim F = 3
    F, H = len(comps), 32

    p = jax.random.normal(k_p, (N, d_in), dtype=jnp.float32)
    weight = jax.random.normal(k_w, (F, H), dtype=jnp.float32) * 0.1
    bias = jax.random.normal(k_b, (H,), dtype=jnp.float32) * 0.1

    # tile_n=128 -> grid of 2 so a megacore part can use both TensorCores.
    out = projected_forward(p, comps, weight, bias, tile_n=128)
    out = jax.block_until_ready(out)

    ref = projected_reference(p, comps, weight, bias)
    assert out.shape == (N, H)
    assert jnp.allclose(out, ref, atol=1e-5, rtol=1e-5), "mismatch vs reference"

    # Also exercise a non-multiple batch size (remainder handling via padding).
    out2 = jax.block_until_ready(
        projected_forward(p[:100], comps, weight, bias, tile_n=128)
    )
    assert jnp.allclose(out2, ref[:100], atol=1e-5, rtol=1e-5), "remainder mismatch"

    print("KERNEL_OK")
</pallas_src>

<mosaic_0001>
module attributes {stable_mosaic.version = 11 : i64} {
  func.func @kernel(%arg0: i32, %arg1: memref<128x2xf32, #tpu.memory_space<vmem>>, %arg2: memref<2x128xf32, #tpu.memory_space<vmem>>, %arg3: memref<1x128xf32, #tpu.memory_space<vmem>>, %arg4: memref<128x128xf32, #tpu.memory_space<vmem>>) attributes {dimension_semantics = [#tpu.dimension_semantics<parallel>], iteration_bounds = array<i64: 2>, scalar_prefetch = 0 : i64, scratch_operands = 0 : i64, tpu.core_type = #tpu.core_type<tc>, window_params = [{transform_indices = @transform_0, window_bounds = array<i64: 128, 2>}, {pipeline_mode = #tpu.pipeline_mode<synchronous>, transform_indices = @transform_1, window_bounds = array<i64: 2, 128>}, {pipeline_mode = #tpu.pipeline_mode<synchronous>, transform_indices = @transform_2, window_bounds = array<i64: 1, 128>}, {transform_indices = @transform_3, window_bounds = array<i64: 128, 128>}]} {
    %c0 = arith.constant 0 : index
    %c0_0 = arith.constant 0 : index
    %0 = vector.load %arg3[%c0, %c0_0] : memref<1x128xf32, #tpu.memory_space<vmem>>, vector<1x128xf32>
    %c0_1 = arith.constant 0 : index
    %c0_2 = arith.constant 0 : index
    %1 = vector.load %arg1[%c0_1, %c0_2] : memref<128x2xf32, #tpu.memory_space<vmem>>, vector<128x1xf32>
    %c0_3 = arith.constant 0 : index
    %c0_4 = arith.constant 0 : index
    %2 = vector.load %arg2[%c0_3, %c0_4] : memref<2x128xf32, #tpu.memory_space<vmem>>, vector<1x128xf32>
    %3 = vector.broadcast %1 : vector<128x1xf32> to vector<128x128xf32>
    %4 = vector.broadcast %2 : vector<1x128xf32> to vector<128x128xf32>
    %5 = arith.mulf %3, %4 : vector<128x128xf32>
    %6 = vector.broadcast %0 : vector<1x128xf32> to vector<128x128xf32>
    %7 = arith.addf %6, %5 : vector<128x128xf32>
    %c0_5 = arith.constant 0 : index
    %c1 = arith.constant 1 : index
    %8 = vector.load %arg1[%c0_5, %c1] : memref<128x2xf32, #tpu.memory_space<vmem>>, vector<128x1xf32>
    %c1_6 = arith.constant 1 : index
    %c0_7 = arith.constant 0 : index
    %9 = vector.load %arg2[%c1_6, %c0_7] : memref<2x128xf32, #tpu.memory_space<vmem>>, vector<1x128xf32>
    %10 = vector.broadcast %8 : vector<128x1xf32> to vector<128x128xf32>
    %11 = vector.broadcast %9 : vector<1x128xf32> to vector<128x128xf32>
    %12 = arith.mulf %10, %11 : vector<128x128xf32>
    %13 = arith.addf %7, %12 : vector<128x128xf32>
    %14 = math.tanh %13 : vector<128x128xf32>
    %c0_8 = arith.constant 0 : index
    %c0_9 = arith.constant 0 : index
    %15 = vector.load %arg4[%c0_8, %c0_9] : memref<128x128xf32, #tpu.memory_space<vmem>>, vector<128x128xf32>
    tpu.vector_store %arg4[%c0_8, %c0_9], %14 {strides = array<i32>} : memref<128x128xf32, #tpu.memory_space<vmem>>, vector<128x128xf32>,
    return
  }
  func.func @transform_0(%arg0: i32) -> (i32, i32) {
    %c0_i32 = arith.constant 0 : i32
    %c0_i32_0 = arith.constant 0 : i32
    return %arg0, %c0_i32 : i32, i32
  }
  func.func @transform_1(%arg0: i32) -> (i32, i32) {
    %c0_i32 = arith.constant 0 : i32
    %c0_i32_0 = arith.constant 0 : i32
    %c0_i32_1 = arith.constant 0 : i32
    return %c0_i32, %c0_i32_0 : i32, i32
  }
  func.func @transform_2(%arg0: i32) -> (i32, i32) {
    %c0_i32 = arith.constant 0 : i32
    %c0_i32_0 = arith.constant 0 : i32
    %c0_i32_1 = arith.constant 0 : i32
    return %c0_i32, %c0_i32_0 : i32, i32
  }
  func.func @transform_3(%arg0: i32) -> (i32, i32) {
    %c0_i32 = arith.constant 0 : i32
    %c0_i32_0 = arith.constant 0 : i32
    return %arg0, %c0_i32 : i32, i32
  }
}

</mosaic_0001>

<llo_original>
// kernel: tpu_custom_call.1
$region0: #{tpu_custom_call.1}
  #allocation0 [shape = 'u32[]', space=smem, size = 0x4, offset = 0x4, fixed_abs, tag = 'smem constant byte address 0x4 - core index']
  #allocation1 [shape = 'u32[72,128]{1,0:T(1,128)}', space=vmem, size = 0x9000, scoped, tag = 'internal scratch']
  %s0 = inlined_call_operand.vmem [shape: f32[256,2], index: 0, kind: input, shape index: {}]
  %s1 = inlined_call_operand.vmem [shape: f32[2,128], index: 1, kind: input, shape index: {}]
  %s2 = inlined_call_operand.vmem [shape: f32[1,128], index: 2, kind: input, shape index: {}]
  %s3 = inlined_call_operand.hbm [shape: f32[256,128], index: 3, kind: output, shape index: {}]
  %s4 = sld [smem:[#allocation0]]
  $region45: #{tpu_custom_call.1} parent=0
    _
  %s6 = ssub.s32 1, %s4
  %s7 = scalar_select 0, %s6, %s4
  $region1: #{tpu_custom_call.1} parent=0
    #allocation2 [shape = 'u8[131072]{0}', space=vmem, size = 0x20000, scoped, tag = 'output window, operand 0']
    #allocation3 [shape = 's32[2]{0}', space=sflag, size = 0x8, scoped, tag = 'scoped memory for tpu_custom_call.1']
    %8 = vsyncpa [#allocation3], 0
    %s9 = scalar_lea.sflag [#allocation3], 1
    %10 = vsyncpa %s9, 0
    loop: start=0, step=1, limit=4
    $region2: #{tpu_custom_call.1} parent=1 // loop_pre_header
      _
    $region3: #{tpu_custom_call.1} parent=1 // loop_header
      %s12 = sphi 0, %s16
      %p13 = scmp.ge.s32.totalorder %s12, 4
      %s22 = sphi 0, %s24
      %s25 = sphi 0, %s22
      %s26 = sphi 0, %s25
      %s42 = sphi 0, %s26
      %s46 = sphi 0, %s46
      %s48 = sphi 0, %s46
      %s49 = sphi 0, %s48
      %s63 = sphi 0, %s49
      %s67 = sphi 0, %s67
      %s69 = sphi 0, %s67
      %s70 = sphi 0, %s69
      %s84 = sphi 0, %s70
      %s90 = sphi 0, %s92
      %s93 = sphi 0, %s90
      %s94 = sphi 0, %s93
      %s110 = sphi 0, %s94
    $region4: #{tpu_custom_call.1} parent=1 // loop_header_branch
      %15 = sbr.rel (%p13) target = $region8
    $region5: #{tpu_custom_call.1} parent=1 // loop_body
      %s17 = ssub.s32 %s12, 1
      %s18 = ssub.s32 %s12, 2
      %s19 = sadd.s32 %s12, 1
      %s20 = ssub.s32 %s12, %s19
      %p21 = scmp.eq.s32.totalorder %s20, 0
      %s23 = sadd.s32 %s22, 1
      %s24 = scalar_select %p21, %s22, %s23
      %p27 = pneg %p21
      %p28 = scmp.eq.s32.totalorder %s12, 1
      %p29 = por %p27, %p28
      %p30 = scmp.ne.s32.totalorder %s22, %s25
      %p31 = scmp.eq.s32.totalorder %s12, 0
      %p32 = por %p30, %p31
      %p33 = scmp.ne.s32.totalorder %s22, %s25
      %p34 = scmp.eq.s32.totalorder %s17, 1
      %p35 = por %p33, %p34
      %p36 = scmp.ne.s32.totalorder %s25, %s26
      %p37 = scmp.eq.s32.totalorder %s17, 0
      %p38 = por %p36, %p37
      %p39 = scmp.ne.s32.totalorder %s25, %s26
      %p40 = scmp.eq.s32.totalorder %s18, 1
      %p41 = por %p39, %p40
      %p43 = scmp.ne.s32.totalorder %s26, %s42
      %p44 = scmp.eq.s32.totalorder %s18, 0
      %p45 = por %p43, %p44
      %s47 = sadd.s32 %s46, 1
      %p50 = scmp.eq.s32.totalorder %s12, 1
      %p51 = scmp.ne.s32.totalorder %s46, %s48
      %p52 = scmp.eq.s32.totalorder %s12, 0
      %p53 = por %p51, %p52
      %p54 = scmp.ne.s32.totalorder %s46, %s48
      %p55 = scmp.eq.s32.totalorder %s17, 1
      %p56 = por %p54, %p55
      %p57 = scmp.ne.s32.totalorder %s48, %s49
      %p58 = scmp.eq.s32.totalorder %s17, 0
      %p59 = por %p57, %p58
      %p60 = scmp.ne.s32.totalorder %s48, %s49
      %p61 = scmp.eq.s32.totalorder %s18, 1
      %p62 = por %p60, %p61
      %p64 = scmp.ne.s32.totalorder %s49, %s63
      %p65 = scmp.eq.s32.totalorder %s18, 0
      %p66 = por %p64, %p65
      %s68 = sadd.s32 %s67, 1
      %p71 = scmp.eq.s32.totalorder %s12, 1
      %p72 = scmp.ne.s32.totalorder %s67, %s69
      %p73 = scmp.eq.s32.totalorder %s12, 0
      %p74 = por %p72, %p73
      %p75 = scmp.ne.s32.totalorder %s67, %s69
      %p76 = scmp.eq.s32.totalorder %s17, 1
      %p77 = por %p75, %p76
      %p78 = scmp.ne.s32.totalorder %s69, %s70
      %p79 = scmp.eq.s32.totalorder %s17, 0
      %p80 = por %p78, %p79
      %p81 = scmp.ne.s32.totalorder %s69, %s70
      %p82 = scmp.eq.s32.totalorder %s18, 1
      %p83 = por %p81, %p82
      %p85 = scmp.ne.s32.totalorder %s70, %s84
      %p86 = scmp.eq.s32.totalorder %s18, 0
      %p87 = por %p85, %p86
      %s88 = ssub.s32 %s12, %s19
      %p89 = scmp.eq.s32.totalorder %s88, 0
      %s91 = sadd.s32 %s90, 1
      %s92 = scalar_select %p89, %s90, %s91
      %p95 = pneg %p89
      %p96 = scmp.eq.s32.totalorder %s12, 1
      %p97 = por %p95, %p96
      %p98 = scmp.ne.s32.totalorder %s90, %s93
      %p99 = scmp.eq.s32.totalorder %s12, 0
      %p100 = por %p98, %p99
      %p101 = scmp.ne.s32.totalorder %s90, %s93
      %p102 = scmp.eq.s32.totalorder %s17, 1
      %p103 = por %p101, %p102
      %p104 = scmp.ne.s32.totalorder %s93, %s94
      %p105 = scmp.eq.s32.totalorder %s17, 0
      %p106 = por %p104, %p105
      %p107 = scmp.ne.s32.totalorder %s93, %s94
      %p108 = scmp.eq.s32.totalorder %s18, 1
      %p109 = por %p107, %p108
      %p111 = scmp.ne.s32.totalorder %s94, %s110
      %p112 = scmp.eq.s32.totalorder %s18, 0
      %p113 = por %p111, %p112
      %p114 = scmp.le.s32.totalorder 1, %s12
      %p115 = scmp.lt.s32.totalorder %s12, 3
      %p116 = pnand %p114, %p115
      %p117 = pneg %p116
      // Predicated region
      $region9: #{tpu_custom_call.1} parent=5 // pred_check
        _
      $region10: #{tpu_custom_call.1} parent=5 // pred_check_branch
        %119 = sbr.rel (%p116) target = $region12
      $region11: #{tpu_custom_call.1} parent=5 // pred_region
        %s120 = ssub.s32 %s12, 1
        // Predicated region
        $region13: #{tpu_custom_call.1} parent=11 // pred_check
          %p121 = pneg %p59
        $region14: #{tpu_custom_call.1} parent=11 // pred_check_branch
          %123 = sbr.rel (%p121) target = $region16
        $region15: #{tpu_custom_call.1} parent=11 // pred_region
          _
        $region16: #{tpu_custom_call.1} parent=11 // pred_fallthru
          _
        // Predicated region
        $region17: #{tpu_custom_call.1} parent=11 // pred_check
          %p124 = pneg %p80
        $region18: #{tpu_custom_call.1} parent=11 // pred_check_branch
          %126 = sbr.rel (%p124) target = $region20
        $region19: #{tpu_custom_call.1} parent=11 // pred_region
          _
        $region20: #{tpu_custom_call.1} parent=11 // pred_fallthru
          _
      $region12: #{tpu_custom_call.1} parent=5 // pred_fallthru
        _
      %p127 = scmp.lt.s32.totalorder %s12, 2
      // Predicated region
      $region21: #{tpu_custom_call.1} parent=5 // pred_check
        %p128 = pneg %p127
      $region22: #{tpu_custom_call.1} parent=5 // pred_check_branch
        %130 = sbr.rel (%p128) target = $region24
      $region23: #{tpu_custom_call.1} parent=5 // pred_region
        // Predicated region
        $region25: #{tpu_custom_call.1} parent=23 // pred_check
          %p131 = pneg %p32
        $region26: #{tpu_custom_call.1} parent=23 // pred_check_branch
          %133 = sbr.rel (%p131) target = $region28
        $region27: #{tpu_custom_call.1} parent=23 // pred_region
          %s134 = smul.u32 16, %s12
          %p135 = scmp.lt.s32.totalorder %s134, 31
          %s136 = scalar_select %p135, %s134, 31
          %s137 = smul.addr %s136, 8
          %s138 = scalar_lea.vmem %s0, %s137
          %s139 = smul.u32 16, %s12
        $region28: #{tpu_custom_call.1} parent=23 // pred_fallthru
          _
      $region24: #{tpu_custom_call.1} parent=5 // pred_fallthru
        _
      %p140 = scmp.le.s32.totalorder 1, %s12
      %p141 = scmp.lt.s32.totalorder %s12, 3
      %p142 = pnand %p140, %p141
      %p143 = pneg %p142
      // Predicated region
      $region29: #{tpu_custom_call.1} parent=5 // pred_check
        _
      $region30: #{tpu_custom_call.1} parent=5 // pred_check_branch
        %145 = sbr.rel (%p142) target = $region32
      $region31: #{tpu_custom_call.1} parent=5 // pred_region
        %s146 = ssub.s32 %s12, 1
        %s147 = smul.u32 16, %s17
        %p148 = scmp.lt.s32.totalorder %s147, 31
        %s149 = scalar_select %p148, %s147, 31
        %s150 = smul.addr %s149, 8
        %s151 = scalar_lea.vmem %s0, %s150
        %p152 = pneg %p38
        %p153 = pneg %p35
        %p154 = pneg %p59
        %p155 = pneg %p56
        %p156 = pneg %p80
        %p157 = pneg %p77
        %p158 = pneg %p106
        %p159 = pneg %p103
        %s160 = sand.u32 %s93, 1
        %s161 = scalar_lea.sflag [#allocation3], %s160
        %s162 = sand.u32 %s93, 1
        %s163 = smul.addr %s162, 128
        %s164 = scalar_lea.vmem [#allocation2], %s163
        %s165 = smul.u32 16, %s17
        %p166 = scmp.lt.s32.totalorder %s165, 31
        %s167 = scalar_select %p166, %s165, 31
        %s168 = smul.addr %s167, 8
        %s169 = scalar_lea.vmem %s0, %s168
        %s170 = smul.u32 16, %s17
        %s171 = smul.u32 16, %s17
        %v172 = vld [vmem:[%s2] sm:$0x1]
        %v173 = vld [vmem:[%s169] sm:$0xff]
        %v174 = vld [vmem:[%s169 + $0x8] sm:$0xff]
        %v175 = vld [vmem:[%s169 + $0x10] sm:$0xff]
        %v176 = vld [vmem:[%s169 + $0x18] sm:$0xff]
        %v177 = vld [vmem:[%s169 + $0x20] sm:$0xff]
        %v178 = vld [vmem:[%s169 + $0x28] sm:$0xff]
        %v179 = vld [vmem:[%s169 + $0x30] sm:$0xff]
        %v180 = vld [vmem:[%s169 + $0x38] sm:$0xff]
        %v181 = vld [vmem:[%s169 + $0x40] sm:$0xff]
        %v182 = vld [vmem:[%s169 + $0x48] sm:$0xff]
        %v183 = vld [vmem:[%s169 + $0x50] sm:$0xff]
        %v184 = vld [vmem:[%s169 + $0x58] sm:$0xff]
        %v185 = vld [vmem:[%s169 + $0x60] sm:$0xff]
        %v186 = vld [vmem:[%s169 + $0x68] sm:$0xff]
        %v187 = vld [vmem:[%s169 + $0x70] sm:$0xff]
        %v188 = vld [vmem:[%s169 + $0x78] sm:$0xff]
        %v189 = vld [vmem:[%s1] sm:$0x1]
        %191 = vset.pattern.permute.xlu0 0
        %192 = vperm.xlu0 %191, %v173
        %v193 = vpop.permute.xlu0 %192
        %196 = vset.pattern.permute.xlu0 0
        %197 = vperm.xlu0 %196, %v174
        %v198 = vpop.permute.xlu0 %197
        %201 = vset.pattern.permute.xlu0 0
        %202 = vperm.xlu0 %201, %v175
        %v203 = vpop.permute.xlu0 %202
        %206 = vset.pattern.permute.xlu0 0
        %207 = vperm.xlu0 %206, %v176
        %v208 = vpop.permute.xlu0 %207
        %211 = vset.pattern.permute.xlu0 0
        %212 = vperm.xlu0 %211, %v177
        %v213 = vpop.permute.xlu0 %212
        %216 = vset.pattern.permute.xlu0 0
        %217 = vperm.xlu0 %216, %v178
        %v218 = vpop.permute.xlu0 %217
        %221 = vset.pattern.permute.xlu0 0
        %222 = vperm.xlu0 %221, %v179
        %v223 = vpop.permute.xlu0 %222
        %226 = vset.pattern.permute.xlu0 0
        %227 = vperm.xlu0 %226, %v180
        %v228 = vpop.permute.xlu0 %227
        %231 = vset.pattern.permute.xlu0 0
        %232 = vperm.xlu0 %231, %v181
        %v233 = vpop.permute.xlu0 %232
        %236 = vset.pattern.permute.xlu0 0
        %237 = vperm.xlu0 %236, %v182
        %v238 = vpop.permute.xlu0 %237
        %241 = vset.pattern.permute.xlu0 0
        %242 = vperm.xlu0 %241, %v183
        %v243 = vpop.permute.xlu0 %242
        %246 = vset.pattern.permute.xlu0 0
        %247 = vperm.xlu0 %246, %v184
        %v248 = vpop.permute.xlu0 %247
        %251 = vset.pattern.permute.xlu0 0
        %252 = vperm.xlu0 %251, %v185
        %v253 = vpop.permute.xlu0 %252
        %256 = vset.pattern.permute.xlu0 0
        %257 = vperm.xlu0 %256, %v186
        %v258 = vpop.permute.xlu0 %257
        %261 = vset.pattern.permute.xlu0 0
        %262 = vperm.xlu0 %261, %v187
        %v263 = vpop.permute.xlu0 %262
        %266 = vset.pattern.permute.xlu0 0
        %267 = vperm.xlu0 %266, %v188
        %v268 = vpop.permute.xlu0 %267
        %v270 = vperm.slane %v189, 0
        %v271 = vmul.f32 %v193, %v270
        %v272 = vmul.f32 %v198, %v270
        %v273 = vmul.f32 %v203, %v270
        %v274 = vmul.f32 %v208, %v270
        %v275 = vmul.f32 %v213, %v270
        %v276 = vmul.f32 %v218, %v270
        %v277 = vmul.f32 %v223, %v270
        %v278 = vmul.f32 %v228, %v270
        %v279 = vmul.f32 %v233, %v270
        %v280 = vmul.f32 %v238, %v270
        %v281 = vmul.f32 %v243, %v270
        %v282 = vmul.f32 %v248, %v270
        %v283 = vmul.f32 %v253, %v270
        %v284 = vmul.f32 %v258, %v270
        %v285 = vmul.f32 %v263, %v270
        %v286 = vmul.f32 %v268, %v270
        %v288 = vperm.slane %v172, 0
        %v290 = vadd.f32 %v288, %v271
        %v291 = vadd.f32 %v288, %v272
        %v292 = vadd.f32 %v288, %v273
        %v293 = vadd.f32 %v288, %v274
        %v294 = vadd.f32 %v288, %v275
        %v295 = vadd.f32 %v288, %v276
        %v296 = vadd.f32 %v288, %v277
        %v297 = vadd.f32 %v288, %v278
        %v298 = vadd.f32 %v288, %v279
        %v299 = vadd.f32 %v288, %v280
        %v300 = vadd.f32 %v288, %v281
        %v301 = vadd.f32 %v288, %v282
        %v302 = vadd.f32 %v288, %v283
        %v303 = vadd.f32 %v288, %v284
        %v304 = vadd.f32 %v288, %v285
        %v305 = vadd.f32 %v288, %v286
        %v306 = vld [vmem:[%s1 + $0x1] sm:$0x1]
        %307 = vset.pattern.permute.xlu0 1
        %308 = vperm.xlu0 %307, %v173
        %v309 = vpop.permute.xlu0 %308
        %311 = vset.pattern.permute.xlu0 1
        %312 = vperm.xlu0 %311, %v174
        %v313 = vpop.permute.xlu0 %312
        %315 = vset.pattern.permute.xlu0 1
        %316 = vperm.xlu0 %315, %v175
        %v317 = vpop.permute.xlu0 %316
        %319 = vset.pattern.permute.xlu0 1
        %320 = vperm.xlu0 %319, %v176
        %v321 = vpop.permute.xlu0 %320
        %323 = vset.pattern.permute.xlu0 1
        %324 = vperm.xlu0 %323, %v177
        %v325 = vpop.permute.xlu0 %324
        %327 = vset.pattern.permute.xlu0 1
        %328 = vperm.xlu0 %327, %v178
        %v329 = vpop.permute.xlu0 %328
        %331 = vset.pattern.permute.xlu0 1
        %332 = vperm.xlu0 %331, %v179
        %v333 = vpop.permute.xlu0 %332
        %335 = vset.pattern.permute.xlu0 1
        %336 = vperm.xlu0 %335, %v180
        %v337 = vpop.permute.xlu0 %336
        %339 = vset.pattern.permute.xlu0 1
        %340 = vperm.xlu0 %339, %v181
        %v341 = vpop.permute.xlu0 %340
        %343 = vset.pattern.permute.xlu0 1
        %344 = vperm.xlu0 %343, %v182
        %v345 = vpop.permute.xlu0 %344
        %347 = vset.pattern.permute.xlu0 1
        %348 = vperm.xlu0 %347, %v183
        %v349 = vpop.permute.xlu0 %348
        %351 = vset.pattern.permute.xlu0 1
        %352 = vperm.xlu0 %351, %v184
        %v353 = vpop.permute.xlu0 %352
        %355 = vset.pattern.permute.xlu0 1
        %356 = vperm.xlu0 %355, %v185
        %v357 = vpop.permute.xlu0 %356
        %359 = vset.pattern.permute.xlu0 1
        %360 = vperm.xlu0 %359, %v186
        %v361 = vpop.permute.xlu0 %360
        %363 = vset.pattern.permute.xlu0 1
        %364 = vperm.xlu0 %363, %v187
        %v365 = vpop.permute.xlu0 %364
        %367 = vset.pattern.permute.xlu0 1
        %368 = vperm.xlu0 %367, %v188
        %v369 = vpop.permute.xlu0 %368
        %v371 = vperm.slane %v306, 0
        %v372 = vmul.f32 %v309, %v371
        %v373 = vmul.f32 %v313, %v371
        %v374 = vmul.f32 %v317, %v371
        %v375 = vmul.f32 %v321, %v371
        %v376 = vmul.f32 %v325, %v371
        %v377 = vmul.f32 %v329, %v371
        %v378 = vmul.f32 %v333, %v371
        %v379 = vmul.f32 %v337, %v371
        %v380 = vmul.f32 %v341, %v371
        %v381 = vmul.f32 %v345, %v371
        %v382 = vmul.f32 %v349, %v371
        %v383 = vmul.f32 %v353, %v371
        %v384 = vmul.f32 %v357, %v371
        %v385 = vmul.f32 %v361, %v371
        %v386 = vmul.f32 %v365, %v371
        %v387 = vmul.f32 %v369, %v371
        %v388 = vadd.f32 %v290, %v372
        %v389 = vadd.f32 %v291, %v373
        %v390 = vadd.f32 %v292, %v374
        %v391 = vadd.f32 %v293, %v375
        %v392 = vadd.f32 %v294, %v376
        %v393 = vadd.f32 %v295, %v377
        %v394 = vadd.f32 %v296, %v378
        %v395 = vadd.f32 %v297, %v379
        %v396 = vadd.f32 %v298, %v380
        %v397 = vadd.f32 %v299, %v381
        %v398 = vadd.f32 %v300, %v382
        %v399 = vadd.f32 %v301, %v383
        %v400 = vadd.f32 %v302, %v384
        %v401 = vadd.f32 %v303, %v385
        %v402 = vadd.f32 %v304, %v386
        %v403 = vadd.f32 %v305, %v387
        %v404 = vtanh.pop %v388
        %v405 = vtanh.pop %v389
        %v406 = vtanh.pop %v390
        %v407 = vtanh.pop %v391
        %v408 = vtanh.pop %v392
        %v409 = vtanh.pop %v393
        %v410 = vtanh.pop %v394
        %v411 = vtanh.pop %v395
        %v412 = vtanh.pop %v396
        %v413 = vtanh.pop %v397
        %v414 = vtanh.pop %v398
        %v415 = vtanh.pop %v399
        %v416 = vtanh.pop %v400
        %v417 = vtanh.pop %v401
        %v418 = vtanh.pop %v402
        %v419 = vtanh.pop %v403
        %420 = vst [vmem:[%s164] sm:$0xff] %v404
        %421 = vst [vmem:[%s164 + $0x8] sm:$0xff] %v405
        %422 = vst [vmem:[%s164 + $0x10] sm:$0xff] %v406
        %423 = vst [vmem:[%s164 + $0x18] sm:$0xff] %v407
        %424 = vst [vmem:[%s164 + $0x20] sm:$0xff] %v408
        %425 = vst [vmem:[%s164 + $0x28] sm:$0xff] %v409
        %426 = vst [vmem:[%s164 + $0x30] sm:$0xff] %v410
        %427 = vst [vmem:[%s164 + $0x38] sm:$0xff] %v411
        %428 = vst [vmem:[%s164 + $0x40] sm:$0xff] %v412
        %429 = vst [vmem:[%s164 + $0x48] sm:$0xff] %v413
        %430 = vst [vmem:[%s164 + $0x50] sm:$0xff] %v414
        %431 = vst [vmem:[%s164 + $0x58] sm:$0xff] %v415
        %432 = vst [vmem:[%s164 + $0x60] sm:$0xff] %v416
        %433 = vst [vmem:[%s164 + $0x68] sm:$0xff] %v417
        %434 = vst [vmem:[%s164 + $0x70] sm:$0xff] %v418
        %435 = vst [vmem:[%s164 + $0x78] sm:$0xff] %v419
        %s436 = sand.u32 %s93, 1
        %s437 = scalar_lea.sflag [#allocation3], %s436
        %s438 = sand.u32 %s93, 1
        %s439 = smul.addr %s438, 128
        %s440 = scalar_lea.vmem [#allocation2], %s439
        // Predicated region
        $region33: #{tpu_custom_call.1} parent=31 // pred_check
          %p441 = pneg %p103
        $region34: #{tpu_custom_call.1} parent=31 // pred_check_branch
          %443 = sbr.rel (%p441) target = $region36
        $region35: #{tpu_custom_call.1} parent=31 // pred_region
          %s444 = smul.u32 16, %s17
          %446 = vsyncadd %s437, 0
          %s447 = smul.addr %s444, 8
          %s448 = scalar_lea.hbm %s3, %s447
          %s449 = sshll.u32 %s440, 4
          %s450 = int_to_ptr.vmem [resolvable:$true] %s449
          %s451 = sshll.u32 %s448, 4
          %s452 = int_to_ptr.hbm [resolvable:$true] %s451
          %457 = dma.vmem_to_hbm [thread:$0]  %s450, 2048, %s452, %s437, 128, 128, 8
        $region36: #{tpu_custom_call.1} parent=31 // pred_fallthru
          _
      $region32: #{tpu_custom_call.1} parent=5 // pred_fallthru
        _
      %p458 = scmp.le.s32.totalorder 2, %s12
      // Predicated region
      $region37: #{tpu_custom_call.1} parent=5 // pred_check
        %p459 = pneg %p458
      $region38: #{tpu_custom_call.1} parent=5 // pred_check_branch
        %461 = sbr.rel (%p459) target = $region40
      $region39: #{tpu_custom_call.1} parent=5 // pred_region
        %s462 = ssub.s32 %s12, 2
        // Predicated region
        $region41: #{tpu_custom_call.1} parent=39 // pred_check
          %p463 = pneg %p109
        $region42: #{tpu_custom_call.1} parent=39 // pred_check_branch
          %465 = sbr.rel (%p463) target = $region44
        $region43: #{tpu_custom_call.1} parent=39 // pred_region
          %s466 = sand.u32 %s94, 1
          %s467 = scalar_lea.sflag [#allocation3], %s466
          %s468 = sand.u32 %s94, 1
          %s469 = smul.addr %s468, 128
          %s470 = scalar_lea.vmem [#allocation2], %s469
          %472 = dma.done %s467, 2048
        $region44: #{tpu_custom_call.1} parent=39 // pred_fallthru
          _
      $region40: #{tpu_custom_call.1} parent=5 // pred_fallthru
        _
    $region6: #{tpu_custom_call.1} parent=1 // loop_footer
      %s16 = sadd.s32 1, %s12
    $region7: #{tpu_custom_call.1} parent=1 // loop_footer_branch
      %11 = sbr.rel target = $region3
    $region8: #{tpu_custom_call.1} parent=1 // loop_exit
      _
    %473 = vsyncpa [#allocation3], 1
    %s474 = scalar_lea.sflag [#allocation3], 1
    %475 = vsyncpa %s474, 1

</llo_original>
